<compile_context>
chip_gen: v7x
topology: tpu7x:2x2x1
jax: 0.10.0
libtpu: 0.0.40
codegen_flags: <defaults>
</compile_context>

<pallas_src>
import functools
import math

import jax
import jax.numpy as jnp
from jax import lax
from jax.experimental import pallas as pl
from jax.experimental.pallas import tpu as pltpu


_EXT = 128  # lane-aligned zero halo on each side of the flattened spatial axis


def _gelu_exact(x):
    # PyTorch nn.GELU() default: exact (erf-based) GELU.
    return 0.5 * x * (1.0 + lax.erf(x * (1.0 / math.sqrt(2.0))))


def _residual_kernel(x_ref, w1_ref, w2_ref, out_ref, src_ref, taps_ref, *, W):
    # x_ref:    (N*C, HW)            whole batch, rows = n*C + c, lane-dense spatial
    # w1_ref:   (N*Cmid, 9*N*C)      block-diagonal (over batch), tap-major columns
    # w2_ref:   (N*Cout, N*Cmid)     block-diagonal (over batch) 1x1 weights
    # out_ref:  (N*C, HW)
    # src_ref:  (3*N*C, HW + 2*_EXT) zero-haloed GELU(x) sources (plain / col-masked)
    # taps_ref: (9*N*C, HW)          stacked shifted taps for the fused matmul
    NC, HW = x_ref.shape

    x = x_ref[...].astype(jnp.float32)             # (NC, HW): full 8-sublane vregs
    a = _gelu_exact(x)                             # GELU of the (unpadded) input

    # Column-wrap masks generated in-kernel (no extra input DMA).
    col = lax.broadcasted_iota(jnp.int32, (1, HW), 1) % W
    not_last = (col != (W - 1)).astype(jnp.float32)   # zero source col W-1 (dx = -1 taps)
    not_first = (col != 0).astype(jnp.float32)        # zero source col 0   (dx = +1 taps)

    # Zero only the two _EXT-wide halo bands; the interior is fully overwritten below.
    # Zero halos make row over/underflow of shifted taps read zeros (== GELU(0)).
    src_ref[:, :_EXT] = jnp.zeros((3 * NC, _EXT), jnp.float32)
    src_ref[:, _EXT + HW:] = jnp.zeros((3 * NC, _EXT), jnp.float32)
    # Plane 0: plain source (dx=0 taps); plane 1: col W-1 zeroed (dx=-1 taps);
    # plane 2: col 0 zeroed (dx=+1 taps).  Masking the wrapped *source* column is
    # equivalent to masking the wrapped outputs for the flattened +-1 lane shifts.
    src_ref[0 * NC:1 * NC, _EXT:_EXT + HW] = a
    src_ref[1 * NC:2 * NC, _EXT:_EXT + HW] = a * not_last
    src_ref[2 * NC:3 * NC, _EXT:_EXT + HW] = a * not_first

    # Stack the 9 shifted taps (tap-major) into one sublane-aligned operand.
    t = 0
    for dy in (-1, 0, 1):
        for dx in (-1, 0, 1):
            s = {0: 0, -1: 1, 1: 2}[dx]
            lo = _EXT + dy * W + dx
            taps_ref[t * NC:(t + 1) * NC, :] = src_ref[s * NC:(s + 1) * NC, lo:lo + HW]
            t += 1

    # Fused 3x3 conv for the whole batch: ONE MXU matmul (N*Cmid, 9*N*C) x (9*N*C, HW).
    h = jnp.dot(w1_ref[...], taps_ref[...], preferred_element_type=jnp.float32)
    hb = _gelu_exact(h)                                                   # (N*Cmid, HW)
    # Fused 1x1 conv: second block-diagonal matmul.
    y = jnp.dot(w2_ref[...], hb, preferred_element_type=jnp.float32)      # (N*Cout, HW)

    # Residual add (module usage requires Cout == C); lane-dense, full-vreg store.
    out_ref[...] = (x + y).astype(out_ref.dtype)


def residual_forward(x_nchw, w1_oihw, w2_oihw):
    """x_nchw: (N, Cin, H, W); w1_oihw: (Cmid, Cin, 3, 3); w2_oihw: (Cout, Cmid, 1, 1).
    Returns x + Conv1x1(GELU(Conv3x3(GELU(x)))) in NCHW."""
    N, C, H, W = x_nchw.shape
    Cmid = w1_oihw.shape[0]
    Cout = w2_oihw.shape[0]
    assert w1_oihw.shape == (Cmid, C, 3, 3)
    assert w2_oihw.shape == (Cout, Cmid, 1, 1)
    assert Cout == C, "residual add requires num_hiddens == in_channels"
    HW = H * W
    NC = N * C

    x2 = x_nchw.reshape(NC, HW)  # free row-major reshape; rows = n*C + c

    # Tap-major 3x3 weights: (9, Cmid, C), tap t = (dy+1)*3 + (dx+1).
    w1_taps = jnp.transpose(w1_oihw, (2, 3, 0, 1)).reshape(9, Cmid, C).astype(jnp.float32)
    w2_mat = w2_oihw.reshape(Cout, Cmid).astype(jnp.float32)

    # Batch-block-diagonal fused weights so the whole batch goes through exactly two
    # MXU matmuls on sublane-dense (rows, HW) operands.
    eye_n = jnp.eye(N, dtype=jnp.float32)
    w1_bd = jnp.einsum("nq,tmc->nmtqc", eye_n, w1_taps).reshape(N * Cmid, 9 * NC)
    w2_bd = jnp.einsum("nq,om->noqm", eye_n, w2_mat).reshape(N * Cout, N * Cmid)

    kernel = functools.partial(_residual_kernel, W=W)

    out2 = pl.pallas_call(
        kernel,
        out_shape=jax.ShapeDtypeStruct((NC, HW), x_nchw.dtype),
        grid_spec=pltpu.PrefetchScalarGridSpec(
            num_scalar_prefetch=0,
            grid=(1,),  # single step: the kernel is overhead-bound at this size
            in_specs=[
                pl.BlockSpec((NC, HW), lambda i: (0, 0)),
                pl.BlockSpec((N * Cmid, 9 * NC), lambda i: (0, 0)),
                pl.BlockSpec((N * Cout, N * Cmid), lambda i: (0, 0)),
            ],
            out_specs=pl.BlockSpec((NC, HW), lambda i: (0, 0)),
            scratch_shapes=[
                pltpu.VMEM((3 * NC, HW + 2 * _EXT), jnp.float32),  # zero-haloed sources
                pltpu.VMEM((9 * NC, HW), jnp.float32),             # stacked taps
            ],
        ),
        compiler_params=pltpu.CompilerParams(dimension_semantics=("arbitrary",)),
    )(x2, w1_bd, w2_bd)

    return out2.reshape(N, C, H, W)


def _reference(x_nchw, w1_oihw, w2_oihw):
    """Pure-JAX reference using lax.conv with PyTorch OIHW weights."""
    a = _gelu_exact(x_nchw)
    h = lax.conv_general_dilated(
        a, w1_oihw, window_strides=(1, 1), padding="SAME",
        dimension_numbers=("NCHW", "OIHW", "NCHW"))
    h = _gelu_exact(h)
    y = lax.conv_general_dilated(
        h, w2_oihw, window_strides=(1, 1), padding="SAME",
        dimension_numbers=("NCHW", "OIHW", "NCHW"))
    return x_nchw + y


if __name__ == "__main__":
    # Module hyperparameters (residual add requires num_hiddens == in_channels).
    in_channels = 4
    num_hiddens = 4
    num_residual_hiddens = 8
    N, H, W = 2, 16, 16

    key = jax.random.PRNGKey(0)
    kx, k1, k2 = jax.random.split(key, 3)

    x = jax.random.normal(kx, (N, in_channels, H, W), dtype=jnp.float32)
    # Deterministic synthetic weights in PyTorch OIHW layout, kaiming-ish scale.
    w1 = jax.random.normal(k1, (num_residual_hiddens, in_channels, 3, 3),
                           dtype=jnp.float32) * (1.0 / math.sqrt(9 * in_channels))
    w2 = jax.random.normal(k2, (num_hiddens, num_residual_hiddens, 1, 1),
                           dtype=jnp.float32) * (1.0 / math.sqrt(num_residual_hiddens))

    out = jax.block_until_ready(residual_forward(x, w1, w2))
    ref = jax.block_until_ready(_reference(x, w1, w2))

    assert out.shape == (N, num_hiddens, H, W), out.shape
    err = float(jnp.max(jnp.abs(out - ref)))
    assert jnp.allclose(out, ref, atol=1e-4, rtol=1e-4), err

    print("KERNEL_OK")
</pallas_src>

<mosaic_0001>
module attributes {stable_mosaic.version = 11 : i64} {
  func.func @_residual_kernel(%arg0: i32, %arg1: memref<8x256xf32, #tpu.memory_space<vmem>>, %arg2: memref<16x72xf32, #tpu.memory_space<vmem>>, %arg3: memref<8x16xf32, #tpu.memory_space<vmem>>, %arg4: memref<8x256xf32, #tpu.memory_space<vmem>>, %arg5: memref<24x512xf32, #tpu.memory_space<vmem>>, %arg6: memref<72x256xf32, #tpu.memory_space<vmem>>) attributes {dimension_semantics = [#tpu.dimension_semantics<arbitrary>], iteration_bounds = array<i64: 1>, scalar_prefetch = 0 : i64, scratch_operands = 2 : i64, tpu.core_type = #tpu.core_type<tc>, window_params = [{pipeline_mode = #tpu.pipeline_mode<synchronous>, transform_indices = @transform_0, window_bounds = array<i64: 8, 256>}, {pipeline_mode = #tpu.pipeline_mode<synchronous>, transform_indices = @transform_1, window_bounds = array<i64: 16, 72>}, {pipeline_mode = #tpu.pipeline_mode<synchronous>, transform_indices = @transform_2, window_bounds = array<i64: 8, 16>}, {pipeline_mode = #tpu.pipeline_mode<synchronous>, transform_indices = @transform_3, window_bounds = array<i64: 8, 256>}]} {
    %c0 = arith.constant 0 : index
    %c0_0 = arith.constant 0 : index
    %0 = vector.load %arg1[%c0, %c0_0] : memref<8x256xf32, #tpu.memory_space<vmem>>, vector<8x256xf32>
    %cst = arith.constant 5.000000e-01 : f32
    %1 = vector.broadcast %cst : f32 to vector<8x256xf32>
    %2 = arith.mulf %1, %0 : vector<8x256xf32>
    %cst_1 = arith.constant 0.707106769 : f32
    %3 = vector.broadcast %cst_1 : f32 to vector<8x256xf32>
    %4 = arith.mulf %0, %3 : vector<8x256xf32>
    %5 = math.erf %4 : vector<8x256xf32>
    %cst_2 = arith.constant 1.000000e+00 : f32
    %6 = vector.broadcast %cst_2 : f32 to vector<8x256xf32>
    %7 = arith.addf %6, %5 : vector<8x256xf32>
    %8 = arith.mulf %2, %7 : vector<8x256xf32>
    %9 = tpu.iota {dimensions = array<i32: 1>} : vector<1x256xi32>
    %c16_i32 = arith.constant 16 : i32
    %c0_i32 = arith.constant 0 : i32
    %10 = arith.cmpi eq, %c16_i32, %c0_i32 : i32
    %c1_i32 = arith.constant 1 : i32
    %11 = arith.select %10, %c1_i32, %c16_i32 : i32
    %12 = vector.broadcast %11 : i32 to vector<1x256xi32>
    %13 = arith.remsi %9, %12 : vector<1x256xi32>
    %c0_i32_3 = arith.constant 0 : i32
    %14 = vector.broadcast %c0_i32_3 : i32 to vector<1x256xi32>
    %15 = arith.cmpi ne, %13, %14 : vector<1x256xi32>
    %c0_i32_4 = arith.constant 0 : i32
    %16 = vector.broadcast %c0_i32_4 : i32 to vector<1x256xi32>
    %17 = arith.cmpi slt, %13, %16 : vector<1x256xi32>
    %c0_i32_5 = arith.constant 0 : i32
    %18 = arith.cmpi slt, %11, %c0_i32_5 : i32
    %19 = vector.broadcast %18 : i1 to vector<1x256xi1>
    %20 = vector.broadcast %19 : vector<1x256xi1> to vector<1x256xi1>
    %21 = arith.xori %17, %20 : vector<1x256xi1>
    %22 = arith.andi %21, %15 : vector<1x256xi1>
    %23 = vector.broadcast %11 : i32 to vector<1x256xi32>
    %24 = arith.addi %13, %23 : vector<1x256xi32>
    %25 = arith.select %22, %24, %13 : vector<1x256xi1>, vector<1x256xi32>
    %c15_i32 = arith.constant 15 : i32
    %26 = vector.broadcast %c15_i32 : i32 to vector<1x256xi32>
    %27 = arith.cmpi ne, %25, %26 : vector<1x256xi32>
    %28 = arith.extui %27 : vector<1x256xi1> to vector<1x256xi32>
    %29 = arith.sitofp %28 : vector<1x256xi32> to vector<1x256xf32>
    %c0_i32_6 = arith.constant 0 : i32
    %30 = vector.broadcast %c0_i32_6 : i32 to vector<1x256xi32>
    %31 = arith.cmpi ne, %25, %30 : vector<1x256xi32>
    %32 = arith.extui %31 : vector<1x256xi1> to vector<1x256xi32>
    %33 = arith.sitofp %32 : vector<1x256xi32> to vector<1x256xf32>
    %cst_7 = arith.constant 0.000000e+00 : f32
    %34 = vector.broadcast %cst_7 : f32 to vector<24x128xf32>
    %c0_8 = arith.constant 0 : index
    %c0_9 = arith.constant 0 : index
    %35 = vector.load %arg5[%c0_8, %c0_9] : memref<24x512xf32, #tpu.memory_space<vmem>>, vector<24x128xf32>
    tpu.vector_store %arg5[%c0_8, %c0_9], %34 {strides = array<i32>} : memref<24x512xf32, #tpu.memory_space<vmem>>, vector<24x128xf32>,
    %cst_10 = arith.constant 0.000000e+00 : f32
    %36 = vector.broadcast %cst_10 : f32 to vector<24x128xf32>
    %c0_11 = arith.constant 0 : index
    %c384 = arith.constant 384 : index
    %37 = vector.load %arg5[%c0_11, %c384] : memref<24x512xf32, #tpu.memory_space<vmem>>, vector<24x128xf32>
    tpu.vector_store %arg5[%c0_11, %c384], %36 {strides = array<i32>} : memref<24x512xf32, #tpu.memory_space<vmem>>, vector<24x128xf32>,
    %c0_12 = arith.constant 0 : index
    %c128 = arith.constant 128 : index
    %38 = vector.load %arg5[%c0_12, %c128] : memref<24x512xf32, #tpu.memory_space<vmem>>, vector<8x256xf32>
    tpu.vector_store %arg5[%c0_12, %c128], %8 {strides = array<i32>} : memref<24x512xf32, #tpu.memory_space<vmem>>, vector<8x256xf32>,
    %39 = vector.broadcast %29 : vector<1x256xf32> to vector<8x256xf32>
    %40 = arith.mulf %8, %39 : vector<8x256xf32>
    %c8 = arith.constant 8 : index
    %c128_13 = arith.constant 128 : index
    %41 = vector.load %arg5[%c8, %c128_13] : memref<24x512xf32, #tpu.memory_space<vmem>>, vector<8x256xf32>
    tpu.vector_store %arg5[%c8, %c128_13], %40 {strides = array<i32>} : memref<24x512xf32, #tpu.memory_space<vmem>>, vector<8x256xf32>,
    %42 = vector.broadcast %33 : vector<1x256xf32> to vector<8x256xf32>
    %43 = arith.mulf %8, %42 : vector<8x256xf32>
    %c16 = arith.constant 16 : index
    %c128_14 = arith.constant 128 : index
    %44 = vector.load %arg5[%c16, %c128_14] : memref<24x512xf32, #tpu.memory_space<vmem>>, vector<8x256xf32>
    tpu.vector_store %arg5[%c16, %c128_14], %43 {strides = array<i32>} : memref<24x512xf32, #tpu.memory_space<vmem>>, vector<8x256xf32>,
    %c8_15 = arith.constant 8 : index
    %c111 = arith.constant 111 : index
    %45 = vector.load %arg5[%c8_15, %c111] : memref<24x512xf32, #tpu.memory_space<vmem>>, vector<8x256xf32>
    %c0_16 = arith.constant 0 : index
    %c0_17 = arith.constant 0 : index
    %46 = vector.load %arg6[%c0_16, %c0_17] : memref<72x256xf32, #tpu.memory_space<vmem>>, vector<8x256xf32>
    tpu.vector_store %arg6[%c0_16, %c0_17], %45 {strides = array<i32>} : memref<72x256xf32, #tpu.memory_space<vmem>>, vector<8x256xf32>,
    %c0_18 = arith.constant 0 : index
    %c112 = arith.constant 112 : index
    %47 = vector.load %arg5[%c0_18, %c112] : memref<24x512xf32, #tpu.memory_space<vmem>>, vector<8x256xf32>
    %c8_19 = arith.constant 8 : index
    %c0_20 = arith.constant 0 : index
    %48 = vector.load %arg6[%c8_19, %c0_20] : memref<72x256xf32, #tpu.memory_space<vmem>>, vector<8x256xf32>
    tpu.vector_store %arg6[%c8_19, %c0_20], %47 {strides = array<i32>} : memref<72x256xf32, #tpu.memory_space<vmem>>, vector<8x256xf32>,
    %c16_21 = arith.constant 16 : index
    %c113 = arith.constant 113 : index
    %49 = vector.load %arg5[%c16_21, %c113] : memref<24x512xf32, #tpu.memory_space<vmem>>, vector<8x256xf32>
    %c16_22 = arith.constant 16 : index
    %c0_23 = arith.constant 0 : index
    %50 = vector.load %arg6[%c16_22, %c0_23] : memref<72x256xf32, #tpu.memory_space<vmem>>, vector<8x256xf32>
    tpu.vector_store %arg6[%c16_22, %c0_23], %49 {strides = array<i32>} : memref<72x256xf32, #tpu.memory_space<vmem>>, vector<8x256xf32>,
    %c8_24 = arith.constant 8 : index
    %c127 = arith.constant 127 : index
    %51 = vector.load %arg5[%c8_24, %c127] : memref<24x512xf32, #tpu.memory_space<vmem>>, vector<8x256xf32>
    %c24 = arith.constant 24 : index
    %c0_25 = arith.constant 0 : index
    %52 = vector.load %arg6[%c24, %c0_25] : memref<72x256xf32, #tpu.memory_space<vmem>>, vector<8x256xf32>
    tpu.vector_store %arg6[%c24, %c0_25], %51 {strides = array<i32>} : memref<72x256xf32, #tpu.memory_space<vmem>>, vector<8x256xf32>,
    %c0_26 = arith.constant 0 : index
    %c128_27 = arith.constant 128 : index
    %53 = vector.load %arg5[%c0_26, %c128_27] : memref<24x512xf32, #tpu.memory_space<vmem>>, vector<8x256xf32>
    %c32 = arith.constant 32 : index
    %c0_28 = arith.constant 0 : index
    %54 = vector.load %arg6[%c32, %c0_28] : memref<72x256xf32, #tpu.memory_space<vmem>>, vector<8x256xf32>
    tpu.vector_store %arg6[%c32, %c0_28], %53 {strides = array<i32>} : memref<72x256xf32, #tpu.memory_space<vmem>>, vector<8x256xf32>,
    %c16_29 = arith.constant 16 : index
    %c129 = arith.constant 129 : index
    %55 = vector.load %arg5[%c16_29, %c129] : memref<24x512xf32, #tpu.memory_space<vmem>>, vector<8x256xf32>
    %c40 = arith.constant 40 : index
    %c0_30 = arith.constant 0 : index
    %56 = vector.load %arg6[%c40, %c0_30] : memref<72x256xf32, #tpu.memory_space<vmem>>, vector<8x256xf32>
    tpu.vector_store %arg6[%c40, %c0_30], %55 {strides = array<i32>} : memref<72x256xf32, #tpu.memory_space<vmem>>, vector<8x256xf32>,
    %c8_31 = arith.constant 8 : index
    %c143 = arith.constant 143 : index
    %57 = vector.load %arg5[%c8_31, %c143] : memref<24x512xf32, #tpu.memory_space<vmem>>, vector<8x256xf32>
    %c48 = arith.constant 48 : index
    %c0_32 = arith.constant 0 : index
    %58 = vector.load %arg6[%c48, %c0_32] : memref<72x256xf32, #tpu.memory_space<vmem>>, vector<8x256xf32>
    tpu.vector_store %arg6[%c48, %c0_32], %57 {strides = array<i32>} : memref<72x256xf32, #tpu.memory_space<vmem>>, vector<8x256xf32>,
    %c0_33 = arith.constant 0 : index
    %c144 = arith.constant 144 : index
    %59 = vector.load %arg5[%c0_33, %c144] : memref<24x512xf32, #tpu.memory_space<vmem>>, vector<8x256xf32>
    %c56 = arith.constant 56 : index
    %c0_34 = arith.constant 0 : index
    %60 = vector.load %arg6[%c56, %c0_34] : memref<72x256xf32, #tpu.memory_space<vmem>>, vector<8x256xf32>
    tpu.vector_store %arg6[%c56, %c0_34], %59 {strides = array<i32>} : memref<72x256xf32, #tpu.memory_space<vmem>>, vector<8x256xf32>,
    %c16_35 = arith.constant 16 : index
    %c145 = arith.constant 145 : index
    %61 = vector.load %arg5[%c16_35, %c145] : memref<24x512xf32, #tpu.memory_space<vmem>>, vector<8x256xf32>
    %c64 = arith.constant 64 : index
    %c0_36 = arith.constant 0 : index
    %62 = vector.load %arg6[%c64, %c0_36] : memref<72x256xf32, #tpu.memory_space<vmem>>, vector<8x256xf32>
    tpu.vector_store %arg6[%c64, %c0_36], %61 {strides = array<i32>} : memref<72x256xf32, #tpu.memory_space<vmem>>, vector<8x256xf32>,
    %c0_37 = arith.constant 0 : index
    %c0_38 = arith.constant 0 : index
    %63 = vector.load %arg2[%c0_37, %c0_38] : memref<16x72xf32, #tpu.memory_space<vmem>>, vector<16x72xf32>
    %c0_39 = arith.constant 0 : index
    %c0_40 = arith.constant 0 : index
    %64 = vector.load %arg6[%c0_39, %c0_40] : memref<72x256xf32, #tpu.memory_space<vmem>>, vector<72x256xf32>
    %cst_41 = arith.constant dense<0.000000e+00> : vector<16x256xf32>
    %65 = tpu.matmul %63, %64, %cst_41 {dimension_numbers = #tpu.dot_dimension_numbers<[1], [0], [0], [1], [0, 0, 1, 1], [], []>} : vector<16x72xf32>, vector<72x256xf32>, vector<16x256xf32> -> vector<16x256xf32>
    %cst_42 = arith.constant 5.000000e-01 : f32
    %66 = vector.broadcast %cst_42 : f32 to vector<16x256xf32>
    %67 = arith.mulf %66, %65 : vector<16x256xf32>
    %cst_43 = arith.constant 0.707106769 : f32
    %68 = vector.broadcast %cst_43 : f32 to vector<16x256xf32>
    %69 = arith.mulf %65, %68 : vector<16x256xf32>
    %70 = math.erf %69 : vector<16x256xf32>
    %cst_44 = arith.constant 1.000000e+00 : f32
    %71 = vector.broadcast %cst_44 : f32 to vector<16x256xf32>
    %72 = arith.addf %71, %70 : vector<16x256xf32>
    %73 = arith.mulf %67, %72 : vector<16x256xf32>
    %c0_45 = arith.constant 0 : index
    %c0_46 = arith.constant 0 : index
    %74 = vector.load %arg3[%c0_45, %c0_46] : memref<8x16xf32, #tpu.memory_space<vmem>>, vector<8x16xf32>
    %cst_47 = arith.constant dense<0.000000e+00> : vector<8x256xf32>
    %75 = tpu.matmul %74, %73, %cst_47 {dimension_numbers = #tpu.dot_dimension_numbers<[1], [0], [0], [1], [0, 0, 1, 1], [], []>} : vector<8x16xf32>, vector<16x256xf32>, vector<8x256xf32> -> vector<8x256xf32>
    %76 = arith.addf %0, %75 : vector<8x256xf32>
    %c0_48 = arith.constant 0 : index
    %c0_49 = arith.constant 0 : index
    %77 = vector.load %arg4[%c0_48, %c0_49] : memref<8x256xf32, #tpu.memory_space<vmem>>, vector<8x256xf32>
    tpu.vector_store %arg4[%c0_48, %c0_49], %76 {strides = array<i32>} : memref<8x256xf32, #tpu.memory_space<vmem>>, vector<8x256xf32>,
    return
  }
  func.func @transform_0(%arg0: i32) -> (i32, i32) {
    %c0_i32 = arith.constant 0 : i32
    %c0_i32_0 = arith.constant 0 : i32
    %c0_i32_1 = arith.constant 0 : i32
    return %c0_i32, %c0_i32_0 : i32, i32
  }
  func.func @transform_1(%arg0: i32) -> (i32, i32) {
    %c0_i32 = arith.constant 0 : i32
    %c0_i32_0 = arith.constant 0 : i32
    %c0_i32_1 = arith.constant 0 : i32
    return %c0_i32, %c0_i32_0 : i32, i32
  }
  func.func @transform_2(%arg0: i32) -> (i32, i32) {
    %c0_i32 = arith.constant 0 : i32
    %c0_i32_0 = arith.constant 0 : i32
    %c0_i32_1 = arith.constant 0 : i32
    return %c0_i32, %c0_i32_0 : i32, i32
  }
  func.func @transform_3(%arg0: i32) -> (i32, i32) {
    %c0_i32 = arith.constant 0 : i32
    %c0_i32_0 = arith.constant 0 : i32
    %c0_i32_1 = arith.constant 0 : i32
    return %c0_i32, %c0_i32_0 : i32, i32
  }
}

</mosaic_0001>

<llo_original>
// kernel: tpu_custom_call.1
$region0: #{tpu_custom_call.1}
  #allocation0 [shape = 'u32[]', space=smem, size = 0x4, offset = 0x4, fixed_abs, tag = 'smem constant byte address 0x4 - core index']
  #allocation1 [shape = 'u32[144,128]{1,0:T(1,128)}', space=vmem, size = 0x12000, scoped, tag = 'internal scratch']
  #allocation2 [shape = 'f32[24,512]{1,0:T(8,128)}', space=vmem, size = 0xc000, scoped, tag = 'scratch operand']
  #allocation3 [shape = 'f32[72,256]{1,0:T(8,128)}', space=vmem, size = 0x12000, scoped, tag = 'scratch operand']
  %s0 = inlined_call_operand.hbm [shape: f32[8,256], index: 0, kind: input, shape index: {}]
  %s1 = inlined_call_operand.hbm [shape: f32[16,72], index: 1, kind: input, shape index: {}]
  %s2 = inlined_call_operand.hbm [shape: f32[8,16], index: 2, kind: input, shape index: {}]
  %s3 = inlined_call_operand.hbm [shape: f32[8,256], index: 3, kind: output, shape index: {}]
  %s4 = sld [smem:[#allocation0]]
  $region34: #{tpu_custom_call.1} parent=0
    _
  %s6 = ssub.s32 1, %s4
  %s7 = scalar_select 0, %s6, %s4
  $region1: #{tpu_custom_call.1} parent=0
    #allocation4 [shape = 'u8[8192]{0}', space=vmem, size = 0x2000, scoped, tag = 'input window, operand 0, single buffered']
    #allocation5 [shape = 's32[1]{0}', space=sflag, size = 0x4, scoped, tag = 'scoped memory for tpu_custom_call.1']
    #allocation6 [shape = 's32[1]{0}', space=sflag, size = 0x4, scoped, tag = 'scoped memory for tpu_custom_call.1']
    #allocation7 [shape = 'u8[8192]{0}', space=vmem, size = 0x2000, scoped, tag = 'input window, operand 1, single buffered']
    #allocation8 [shape = 's32[1]{0}', space=sflag, size = 0x4, scoped, tag = 'scoped memory for tpu_custom_call.1']
    #allocation9 [shape = 'u8[4096]{0}', space=vmem, size = 0x1000, scoped, tag = 'input window, operand 2, single buffered']
    #allocation10 [shape = 'u8[8192]{0}', space=vmem, size = 0x2000, scoped, tag = 'output window, operand 0, single buffered']
    %8 = vsyncpa [#allocation5], 0
    %9 = vsyncpa [#allocation8], 0
    %10 = vsyncpa [#allocation6], 0
    // Predicated region
    $region2: #{tpu_custom_call.1} parent=1 // pred_check
      _
    $region3: #{tpu_custom_call.1} parent=1 // pred_check_branch
      %12 = sbr.rel (0) target = $region5
    $region4: #{tpu_custom_call.1} parent=1 // pred_region
      %s14 = ssub.s32 256, 256
      %15 = vsyncadd [#allocation5], %s14
      %s17 = sshll.u32 [#allocation4], 4
      %s18 = int_to_ptr.vmem [resolvable:$true] %s17
      %20 = dma.hbm_to_vmem [thread:$0]  %s0, 256, %s18, [#allocation5]
    $region5: #{tpu_custom_call.1} parent=1 // pred_fallthru
      _
    // Predicated region
    $region6: #{tpu_custom_call.1} parent=1 // pred_check
      _
    $region7: #{tpu_custom_call.1} parent=1 // pred_check_branch
      %22 = sbr.rel (0) target = $region9
    $region8: #{tpu_custom_call.1} parent=1 // pred_region
      %s24 = ssub.s32 256, 256
      %25 = vsyncadd [#allocation8], %s24
      %s26 = sshll.u32 [#allocation7], 4
      %s27 = int_to_ptr.vmem [resolvable:$true] %s26
      %32 = dma.hbm_to_vmem [thread:$0]  %s1, 256, %s27, [#allocation8], 128, 128, 8
    $region9: #{tpu_custom_call.1} parent=1 // pred_fallthru
      _
    // Predicated region
    $region10: #{tpu_custom_call.1} parent=1 // pred_check
      _
    $region11: #{tpu_custom_call.1} parent=1 // pred_check_branch
      %34 = sbr.rel (0) target = $region13
    $region12: #{tpu_custom_call.1} parent=1 // pred_region
      %s36 = ssub.s32 128, 128
      %37 = vsyncadd [#allocation8], %s36
      %s39 = sshll.u32 [#allocation9], 4
      %s40 = int_to_ptr.vmem [resolvable:$true] %s39
      %42 = dma.hbm_to_vmem [thread:$0]  %s2, 128, %s40, [#allocation8]
    $region13: #{tpu_custom_call.1} parent=1 // pred_fallthru
      _
    // Predicated region
    $region14: #{tpu_custom_call.1} parent=1 // pred_check
      _
    $region15: #{tpu_custom_call.1} parent=1 // pred_check_branch
      %44 = sbr.rel (0) target = $region17
    $region16: #{tpu_custom_call.1} parent=1 // pred_region
      %45 = dma.done [#allocation5], 256
    $region17: #{tpu_custom_call.1} parent=1 // pred_fallthru
      _
    // Predicated region
    $region18: #{tpu_custom_call.1} parent=1 // pred_check
      _
    $region19: #{tpu_custom_call.1} parent=1 // pred_check_branch
      %47 = sbr.rel (0) target = $region21
    $region20: #{tpu_custom_call.1} parent=1 // pred_region
      %48 = dma.done [#allocation8], 256
    $region21: #{tpu_custom_call.1} parent=1 // pred_fallthru
      _
    // Predicated region
    $region22: #{tpu_custom_call.1} parent=1 // pred_check
      _
    $region23: #{tpu_custom_call.1} parent=1 // pred_check_branch
      %50 = sbr.rel (0) target = $region25
    $region24: #{tpu_custom_call.1} parent=1 // pred_region
      %51 = dma.done [#allocation8], 128
    $region25: #{tpu_custom_call.1} parent=1 // pred_fallthru
      _
    %v52 = vld [vmem:[#allocation4] sm:$0xff]
    %v53 = vld [vmem:[#allocation4 + $0x8] sm:$0xff]
    %v54 = vmul.f32 %v52, 0.5
    %v55 = vmul.f32 %v53, 0.5
    %v56 = vmul.f32 %v52, 0.70710677
    %v57 = vmul.f32 %v53, 0.70710677
    %v58 = verf.f32.pop %v56
    %v59 = verf.f32.pop %v57
    %v60 = vadd.f32 %v58, 1.0
    %v61 = vadd.f32 %v59, 1.0
    %v62 = vmul.f32 %v54, %v60
    %v63 = vmul.f32 %v55, %v61
    %v64 = vlaneseq
    %v65 = vand.u32 %v64, 127
    %v66 = vadd.s32 %v65, 128
    %vm67 = vcmp.lt.s32.totalorder %v65, 0
    %v68 = vsub.s32 0, %v65
    %v69 = vsel %vm67, %v68, %v65
    %v70 = vshrl.u32 %v69, 4
    %v71 = vand.u32 %v69, 15
    %v72 = vsub.s32 0, %v71
    %v73 = vsel %vm67, %v72, %v71
    %vm74 = vcmp.lt.s32.totalorder %v66, 0
    %v75 = vsub.s32 0, %v66
    %v76 = vsel %vm74, %v75, %v66
    %v77 = vshrl.u32 %v76, 4
    %v78 = vand.u32 %v76, 15
    %v79 = vsub.s32 0, %v78
    %v80 = vsel %vm74, %v79, %v78
    %vm81 = vcmp.ne.s32.totalorder %v73, 0
    %vm82 = vcmp.ne.s32.totalorder %v80, 0
    %vm83 = vcmp.lt.s32.totalorder %v73, 0
    %vm84 = vcmp.lt.s32.totalorder %v80, 0
    %vm85 = vmand %vm83, %vm81
    %vm86 = vmand %vm84, %vm82
    %v87 = vadd.s32 %v73, 16
    %v88 = vadd.s32 %v80, 16
    %v89 = vsel %vm85, %v87, %v73
    %v90 = vsel %vm86, %v88, %v80
    %vm91 = vcmp.ne.s32.totalorder %v89, 15
    %vm92 = vcmp.ne.s32.totalorder %v90, 15
    %v93 = vsel %vm91, 1, 0
    %v94 = vsel %vm92, 1, 0
    %v95 = vcvt.s32.f32 %v93
    %v96 = vcvt.s32.f32 %v94
    %vm97 = vcmp.ne.s32.totalorder %v89, 0
    %vm98 = vcmp.ne.s32.totalorder %v90, 0
    %v99 = vsel %vm97, 1, 0
    %v100 = vsel %vm98, 1, 0
    %v101 = vcvt.s32.f32 %v99
    %v102 = vcvt.s32.f32 %v100
    %103 = vst [vmem:[#allocation2] sm:$0xff] 0.0
    %104 = vst [vmem:[#allocation2 + $0x20] sm:$0xff] 0.0
    %105 = vst [vmem:[#allocation2 + $0x40] sm:$0xff] 0.0
    %106 = vst [vmem:[#allocation2 + $0x18] sm:$0xff] 0.0
    %107 = vst [vmem:[#allocation2 + $0x38] sm:$0xff] 0.0
    %108 = vst [vmem:[#allocation2 + $0x58] sm:$0xff] 0.0
    %109 = vst [vmem:[#allocation2 + $0x8] sm:$0xff] %v62
    %110 = vst [vmem:[#allocation2 + $0x10] sm:$0xff] %v63
    %v111 = vmul.f32 %v62, %v95
    %v112 = vmul.f32 %v63, %v96
    %113 = vst [vmem:[#allocation2 + $0x28] sm:$0xff] %v111
    %114 = vst [vmem:[#allocation2 + $0x30] sm:$0xff] %v112
    %v115 = vmul.f32 %v62, %v101
    %v116 = vmul.f32 %v63, %v102
    %117 = vst [vmem:[#allocation2 + $0x48] sm:$0xff] %v115
    %118 = vst [vmem:[#allocation2 + $0x50] sm:$0xff] %v116
    %v119 = vld [vmem:[#allocation2 + $0x20] sm:$0xff]
    %v120 = vld [vmem:[#allocation2 + $0x28] sm:$0xff]
    %v121 = vld [vmem:[#allocation2 + $0x30] sm:$0xff]
    %125 = vrot.lane.b32.xlu0 %v119, 17
    %v126 = vpop.permute.xlu0 %125
    %127 = vrot.lane.b32.xlu0 %v120, 17
    %v128 = vpop.permute.xlu0 %127
    %129 = vrot.lane.b32.xlu0 %v121, 17
    %v130 = vpop.permute.xlu0 %129
    %vm131 = vcmask 138240
    %v132 = vsel %vm131, %v126, %v128
    %v133 = vsel %vm131, %v128, %v130
    %136 = vst [vmem:[#allocation3] sm:$0xff] %v132
    %137 = vst [vmem:[#allocation3 + $0x8] sm:$0xff] %v133
    %v138 = vld [vmem:[#allocation2] sm:$0xff]
    %v139 = vld [vmem:[#allocation2 + $0x8] sm:$0xff]
    %v140 = vld [vmem:[#allocation2 + $0x10] sm:$0xff]
    %144 = vrot.lane.b32.xlu0 %v138, 16
    %v145 = vpop.permute.xlu0 %144
    %146 = vrot.lane.b32.xlu0 %v139, 16
    %v147 = vpop.permute.xlu0 %146
    %148 = vrot.lane.b32.xlu0 %v140, 16
    %v149 = vpop.permute.xlu0 %148
    %vm150 = vcmask 130048
    %v151 = vsel %vm150, %v145, %v147
    %v152 = vsel %vm150, %v147, %v149
    %155 = vst [vmem:[#allocation3 + $0x10] sm:$0xff] %v151
    %156 = vst [vmem:[#allocation3 + $0x18] sm:$0xff] %v152
    %v157 = vld [vmem:[#allocation2 + $0x40] sm:$0xff]
    %v158 = vld [vmem:[#allocation2 + $0x48] sm:$0xff]
    %v159 = vld [vmem:[#allocation2 + $0x50] sm:$0xff]
    %163 = vrot.lane.b32.xlu0 %v157, 15
    %v164 = vpop.permute.xlu0 %163
    %165 = vrot.lane.b32.xlu0 %v158, 15
    %v166 = vpop.permute.xlu0 %165
    %167 = vrot.lane.b32.xlu0 %v159, 15
    %v168 = vpop.permute.xlu0 %167
    %vm169 = vcmask 121856
    %v170 = vsel %vm169, %v164, %v166
    %v171 = vsel %vm169, %v166, %v168
    %174 = vst [vmem:[#allocation3 + $0x20] sm:$0xff] %v170
    %175 = vst [vmem:[#allocation3 + $0x28] sm:$0xff] %v171
    %v176 = vld [vmem:[#allocation2 + $0x20] sm:$0xff]
    %v177 = vld [vmem:[#allocation2 + $0x28] sm:$0xff]
    %v178 = vld [vmem:[#allocation2 + $0x30] sm:$0xff]
    %182 = vrot.lane.b32.xlu0 %v176, 1
    %v183 = vpop.permute.xlu0 %182
    %184 = vrot.lane.b32.xlu0 %v177, 1
    %v185 = vpop.permute.xlu0 %184
    %186 = vrot.lane.b32.xlu0 %v178, 1
    %v187 = vpop.permute.xlu0 %186
    %vm188 = vcmask 7168
    %v189 = vsel %vm188, %v183, %v185
    %v190 = vsel %vm188, %v185, %v187
    %193 = vst [vmem:[#allocation3 + $0x30] sm:$0xff] %v189
    %194 = vst [vmem:[#allocation3 + $0x38] sm:$0xff] %v190
    %v195 = vld [vmem:[#allocation2 + $0x8] sm:$0xff]
    %v196 = vld [vmem:[#allocation2 + $0x10] sm:$0xff]
    %197 = vst [vmem:[#allocation3 + $0x40] sm:$0xff] %v195
    %198 = vst [vmem:[#allocation3 + $0x48] sm:$0xff] %v196
    %v199 = vld [vmem:[#allocation2 + $0x48] sm:$0xff]
    %v200 = vld [vmem:[#allocation2 + $0x50] sm:$0xff]
    %v201 = vld [vmem:[#allocation2 + $0x58] sm:$0xff]
    %205 = vrot.lane.b32.xlu0 %v199, 127
    %v206 = vpop.permute.xlu0 %205
    %207 = vrot.lane.b32.xlu0 %v200, 127
    %v208 = vpop.permute.xlu0 %207
    %209 = vrot.lane.b32.xlu0 %v201, 127
    %v210 = vpop.permute.xlu0 %209
    %vm211 = vcmask 1039360
    %v212 = vsel %vm211, %v206, %v208
    %v213 = vsel %vm211, %v208, %v210
    %216 = vst [vmem:[#allocation3 + $0x50] sm:$0xff] %v212
    %217 = vst [vmem:[#allocation3 + $0x58] sm:$0xff] %v213
    %v218 = vld [vmem:[#allocation2 + $0x28] sm:$0xff]
    %v219 = vld [vmem:[#allocation2 + $0x30] sm:$0xff]
    %v220 = vld [vmem:[#allocation2 + $0x38] sm:$0xff]
    %224 = vrot.lane.b32.xlu0 %v218, 113
    %v225 = vpop.permute.xlu0 %224
    %226 = vrot.lane.b32.xlu0 %v219, 113
    %v227 = vpop.permute.xlu0 %226
    %228 = vrot.lane.b32.xlu0 %v220, 113
    %v229 = vpop.permute.xlu0 %228
    %vm230 = vcmask 924672
    %v231 = vsel %vm230, %v225, %v227
    %v232 = vsel %vm230, %v227, %v229
    %235 = vst [vmem:[#allocation3 + $0x60] sm:$0xff] %v231
    %236 = vst [vmem:[#allocation3 + $0x68] sm:$0xff] %v232
    %v237 = vld [vmem:[#allocation2 + $0x8] sm:$0xff]
    %v238 = vld [vmem:[#allocation2 + $0x10] sm:$0xff]
    %v239 = vld [vmem:[#allocation2 + $0x18] sm:$0xff]
    %243 = vrot.lane.b32.xlu0 %v237, 112
    %v244 = vpop.permute.xlu0 %243
    %245 = vrot.lane.b32.xlu0 %v238, 112
    %v246 = vpop.permute.xlu0 %245
    %247 = vrot.lane.b32.xlu0 %v239, 112
    %v248 = vpop.permute.xlu0 %247
    %vm249 = vcmask 916480
    %v250 = vsel %vm249, %v244, %v246
    %v251 = vsel %vm249, %v246, %v248
    %254 = vst [vmem:[#allocation3 + $0x70] sm:$0xff] %v250
    %255 = vst [vmem:[#allocation3 + $0x78] sm:$0xff] %v251
    %v256 = vld [vmem:[#allocation2 + $0x48] sm:$0xff]
    %v257 = vld [vmem:[#allocation2 + $0x50] sm:$0xff]
    %v258 = vld [vmem:[#allocation2 + $0x58] sm:$0xff]
    %262 = vrot.lane.b32.xlu0 %v256, 111
    %v263 = vpop.permute.xlu0 %262
    %264 = vrot.lane.b32.xlu0 %v257, 111
    %v265 = vpop.permute.xlu0 %264
    %266 = vrot.lane.b32.xlu0 %v258, 111
    %v267 = vpop.permute.xlu0 %266
    %vm268 = vcmask 908288
    %v269 = vsel %vm268, %v263, %v265
    %v270 = vsel %vm268, %v265, %v267
    %273 = vst [vmem:[#allocation3 + $0x80] sm:$0xff] %v269
    %274 = vst [vmem:[#allocation3 + $0x88] sm:$0xff] %v270
    %v275 = vld [vmem:[#allocation7] sm:$0xff]
    %v276 = vld [vmem:[#allocation7 + $0x8] sm:$0xff]
    %v277 = vld [vmem:[#allocation3] sm:$0xff]
    %v278 = vld [vmem:[#allocation3 + $0x8] sm:$0xff]
    %v279 = vld [vmem:[#allocation3 + $0x10] sm:$0xff]
    %v280 = vld [vmem:[#allocation3 + $0x18] sm:$0xff]
    %v281 = vld [vmem:[#allocation3 + $0x20] sm:$0xff]
    %v282 = vld [vmem:[#allocation3 + $0x28] sm:$0xff]
    %v283 = vld [vmem:[#allocation3 + $0x30] sm:$0xff]
    %v284 = vld [vmem:[#allocation3 + $0x38] sm:$0xff]
    %v285 = vld [vmem:[#allocation3 + $0x40] sm:$0xff]
    %v286 = vld [vmem:[#allocation3 + $0x48] sm:$0xff]
    %v287 = vld [vmem:[#allocation3 + $0x50] sm:$0xff]
    %v288 = vld [vmem:[#allocation3 + $0x58] sm:$0xff]
    %v289 = vld [vmem:[#allocation3 + $0x60] sm:$0xff]
    %v290 = vld [vmem:[#allocation3 + $0x68] sm:$0xff]
    %v291 = vld [vmem:[#allocation3 + $0x70] sm:$0xff]
    %v292 = vld [vmem:[#allocation3 + $0x78] sm:$0xff]
    %v293 = vld [vmem:[#allocation3 + $0x80] sm:$0xff]
    %v294 = vld [vmem:[#allocation3 + $0x88] sm:$0xff]
    %vm295 = vcmask 588800
    %v297 = vsel %vm295, %v275, 0
    %v300 = vsel %vm295, %v276, 0
    %302 = vmatprep.subr.mxu0 %v278
    %303 = vmatpush1.msra.mxu0 %v277
    %304 = vmatprep.subr.mxu0 %v280
    %305 = vmatpush1.msra.mxu0 %v279
    %306 = vmatprep.subr.mxu0 %v282
    %307 = vmatpush1.msra.mxu0 %v281
    %308 = vmatprep.subr.mxu0 %v284
    %309 = vmatpush1.msra.mxu0 %v283
    %310 = vmatprep.subr.mxu0 %v286
    %311 = vmatpush1.msra.mxu0 %v285
    %312 = vmatprep.subr.mxu0 %v288
    %313 = vmatpush1.msra.mxu0 %v287
    %314 = vmatprep.subr.mxu0 %v290
    %315 = vmatpush1.msra.mxu0 %v289
    %316 = vmatprep.subr.mxu0 %v292
    %317 = vmatpush1.msra.mxu0 %v291
    %318 = vmatprep.subr.mxu0 %v294
    %319 = vmatpush1.msra.mxu0 %v293
    %320 = vmatprep.subr.mxu0 0.0
    %321 = vmatpush1.msra.mxu0 0.0
    %322 = vmatprep.subr.mxu0 0.0
    %323 = vmatpush1.msra.mxu0 0.0
    %324 = vmatprep.subr.mxu0 0.0
    %325 = vmatpush1.msra.mxu0 0.0
    %326 = vmatprep.subr.mxu0 0.0
    %327 = vmatpush1.msra.mxu0 0.0
    %328 = vmatprep.subr.mxu0 0.0
    %329 = vmatpush1.msra.mxu0 0.0
    %330 = vmatprep.subr.mxu0 0.0
    %331 = vmatpush1.msra.mxu0 0.0
    %332 = vmatprep.subr.mxu0 0.0
    %333 = vmatpush1.msra.mxu0 0.0
    %334 = vmatprep.subr.mxu0 0.0
    %335 = vmatpush1.msra.mxu0 0.0
    %336 = vmatprep.subr.mxu0 0.0
    %337 = vmatpush1.msra.mxu0 0.0
    %338 = vmatprep.subr.mxu0 0.0
    %339 = vmatpush1.msra.mxu0 0.0
    %340 = vmatprep.subr.mxu0 0.0
    %341 = vmatpush1.msra.mxu0 0.0
    %342 = vmatprep.subr.mxu0 0.0
    %343 = vmatpush1.msra.mxu0 0.0
    %344 = vmatprep.subr.mxu0 0.0
    %345 = vmatpush1.msra.mxu0 0.0
    %346 = vmatprep.subr.mxu0 0.0
    %347 = vmatpush1.msra.mxu0 0.0
    %348 = vmatprep.subr.mxu0 0.0
    %349 = vmatpush1.msra.mxu0 0.0
    %350 = vmatprep.subr.mxu0 0.0
    %351 = vmatpush1.msra.mxu0 0.0
    %352 = vmatprep.subr.mxu0 0.0
    %353 = vmatpush1.msra.mxu0 0.0
    %354 = vmatprep.subr.mxu0 0.0
    %355 = vmatpush1.msra.mxu0 0.0
    %356 = vmatprep.subr.mxu0 0.0
    %357 = vmatpush1.msra.mxu0 0.0
    %358 = vmatprep.subr.mxu0 0.0
    %359 = vmatpush1.msra.mxu0 0.0
    %360 = vmatprep.subr.mxu0 0.0
    %361 = vmatpush1.msra.mxu0 0.0
    %362 = vmatprep.subr.mxu0 0.0
    %363 = vmatpush1.msra.mxu0 0.0
    %364 = vmatprep.subr.mxu0 0.0
    %365 = vmatpush1.msra.mxu0 0.0
    %366 = vmatprep.mubr.f32.mxu0 0.0
    %367 = vmatmul.mubr.f32.gmra.mrb[0].mxu0 %v297
    %v368 = vpop.f32.mrb[0].mxu0
    %v369 = vadd.f32 0.0, %v368
    %v370 = vpop.f32.mrb[0].mxu0
    %v371 = vadd.f32 0.0, %v370
    %372 = vmatprep.mubr.f32.mxu0 0.0
    %373 = vmatmul.mubr.f32.gmra.mrb[0].mxu0 %v300
    %v374 = vpop.f32.mrb[0].mxu0
    %v375 = vadd.f32 0.0, %v374
    %v376 = vpop.f32.mrb[0].mxu0
    %v377 = vadd.f32 0.0, %v376
    %378 = vdwg.mxu0
    %v379 = vmul.f32 %v369, 0.5
    %v380 = vmul.f32 %v371, 0.5
    %v381 = vmul.f32 %v375, 0.5
    %v382 = vmul.f32 %v377, 0.5
    %v383 = vmul.f32 %v369, 0.70710677
    %v384 = vmul.f32 %v371, 0.70710677
    %v385 = vmul.f32 %v375, 0.70710677
    %v386 = vmul.f32 %v377, 0.70710677
    %v387 = verf.f32.pop %v383
    %v388 = verf.f32.pop %v384
    %v389 = verf.f32.pop %v385
    %v390 = verf.f32.pop %v386
    %v391 = vadd.f32 %v387, 1.0
    %v392 = vadd.f32 %v388, 1.0
    %v393 = vadd.f32 %v389, 1.0
    %v394 = vadd.f32 %v390, 1.0
    %v395 = vmul.f32 %v379, %v391
    %v396 = vmul.f32 %v380, %v392
    %v397 = vmul.f32 %v381, %v393
    %v398 = vmul.f32 %v382, %v394
    %v399 = vld [vmem:[#allocation9] sm:$0xff]
    %v401 = vsel %vm150, %v399, 0
    %403 = vmatprep.subr.mxu0 %v396
    %404 = vmatpush1.msra.mxu0 %v395
    %405 = vmatprep.subr.mxu0 %v398
    %406 = vmatpush1.msra.mxu0 %v397
    %407 = vmatprep.subr.mxu0 0.0
    %408 = vmatpush1.msra.mxu0 0.0
    %409 = vmatprep.subr.mxu0 0.0
    %410 = vmatpush1.msra.mxu0 0.0
    %411 = vmatprep.subr.mxu0 0.0
    %412 = vmatpush1.msra.mxu0 0.0
    %413 = vmatprep.subr.mxu0 0.0
    %414 = vmatpush1.msra.mxu0 0.0
    %415 = vmatprep.subr.mxu0 0.0
    %416 = vmatpush1.msra.mxu0 0.0
    %417 = vmatprep.subr.mxu0 0.0
    %418 = vmatpush1.msra.mxu0 0.0
    %419 = vmatprep.subr.mxu0 0.0
    %420 = vmatpush1.msra.mxu0 0.0
    %421 = vmatprep.subr.mxu0 0.0
    %422 = vmatpush1.msra.mxu0 0.0
    %423 = vmatprep.subr.mxu0 0.0
    %424 = vmatpush1.msra.mxu0 0.0
    %425 = vmatprep.subr.mxu0 0.0
    %426 = vmatpush1.msra.mxu0 0.0
    %427 = vmatprep.subr.mxu0 0.0
    %428 = vmatpush1.msra.mxu0 0.0
    %429 = vmatprep.subr.mxu0 0.0
    %430 = vmatpush1.msra.mxu0 0.0
    %431 = vmatprep.subr.mxu0 0.0
    %432 = vmatpush1.msra.mxu0 0.0
    %433 = vmatprep.subr.mxu0 0.0
    %434 = vmatpush1.msra.mxu0 0.0
    %435 = vmatprep.subr.mxu0 0.0
    %436 = vmatpush1.msra.mxu0 0.0
    %437 = vmatprep.subr.mxu0 0.0
    %438 = vmatpush1.msra.mxu0 0.0
    %439 = vmatprep.subr.mxu0 0.0
    %440 = vmatpush1.msra.mxu0 0.0
    %441 = vmatprep.subr.mxu0 0.0
    %442 = vmatpush1.msra.mxu0 0.0
    %443 = vmatprep.subr.mxu0 0.0
    %444 = vmatpush1.msra.mxu0 0.0
    %445 = vmatprep.subr.mxu0 0.0
    %446 = vmatpush1.msra.mxu0 0.0
    %447 = vmatprep.subr.mxu0 0.0
    %448 = vmatpush1.msra.mxu0 0.0
    %449 = vmatprep.subr.mxu0 0.0
    %450 = vmatpush1.msra.mxu0 0.0
    %451 = vmatprep.subr.mxu0 0.0
    %452 = vmatpush1.msra.mxu0 0.0
    %453 = vmatprep.subr.mxu0 0.0
    %454 = vmatpush1.msra.mxu0 0.0
    %455 = vmatprep.subr.mxu0 0.0
    %456 = vmatpush1.msra.mxu0 0.0
    %457 = vmatprep.subr.mxu0 0.0
    %458 = vmatpush1.msra.mxu0 0.0
    %459 = vmatprep.subr.mxu0 0.0
    %460 = vmatpush1.msra.mxu0 0.0
    %461 = vmatprep.subr.mxu0 0.0
    %462 = vmatpush1.msra.mxu0 0.0
    %463 = vmatprep.subr.mxu0 0.0
    %464 = vmatpush1.msra.mxu0 0.0
    %465 = vmatprep.subr.mxu0 0.0
    %466 = vmatpush1.msra.mxu0 0.0
    %467 = vmatprep.mubr.f32.mxu0 0.0
    %468 = vmatmul.mubr.f32.gmra.mrb[0].mxu0 %v401
    %v469 = vpop.f32.mrb[0].mxu0
    %v470 = vadd.f32 0.0, %v469
    %v471 = vpop.f32.mrb[0].mxu0
    %v472 = vadd.f32 0.0, %v471
    %473 = vdwg.mxu0
    %v474 = vadd.f32 %v52, %v470
    %v475 = vadd.f32 %v53, %v472
    %476 = vst [vmem:[#allocation10] sm:$0xff] %v474
    %477 = vst [vmem:[#allocation10 + $0x8] sm:$0xff] %v475
    // Predicated region
    $region26: #{tpu_custom_call.1} parent=1 // pred_check
      _
    $region27: #{tpu_custom_call.1} parent=1 // pred_check_branch
      %479 = sbr.rel (0) target = $region29
    $region28: #{tpu_custom_call.1} parent=1 // pred_region
      %s481 = ssub.s32 256, 256
      %482 = vsyncadd [#allocation6], %s481
      %s484 = sshll.u32 [#allocation10], 4
      %s485 = int_to_ptr.vmem [resolvable:$true] %s484
      %487 = dma.vmem_to_hbm [thread:$0]  %s485, 256, %s3, [#allocation6]
    $region29: #{tpu_custom_call.1} parent=1 // pred_fallthru
      _
    // Predicated region
    $region30: #{tpu_custom_call.1} parent=1 // pred_check
      _
    $region31: #{tpu_custom_call.1} parent=1 // pred_check_branch
      %489 = sbr.rel (0) target = $region33
    $region32: #{tpu_custom_call.1} parent=1 // pred_region
      %490 = dma.done [#allocation6], 256
    $region33: #{tpu_custom_call.1} parent=1 // pred_fallthru
      _
    %491 = vsyncpa [#allocation5], 1
    %492 = vsyncpa [#allocation8], 1
    %493 = vsyncpa [#allocation6], 1

</llo_original>
